<compile_context>
chip_gen: v7x
topology: tpu7x:2x2x1
jax: 0.10.0
libtpu: 0.0.40
codegen_flags: <defaults>
</compile_context>

<pallas_src>
import functools

import jax
import jax.numpy as jnp
from jax.experimental import pallas as pl
from jax.experimental.pallas import tpu as pltpu


_LANE = 128
_TARGET_BLOCK_BYTES = 2 * 1024 * 1024      # ~2 MiB logits block per grid step
_VMEM_BUDGET_BYTES = 40 * 1024 * 1024      # stays inside v7x's 64 MiB/TC
_MAX_TILE = 128 * 1024                     # hard cap on lanes per tile


def _per_lane_vmem_bytes(c, in_bytes):
    # double-buffered inputs (logits + int32 targets) + 2 f32 scratch rows
    # + rough allowance for f32 compute temporaries (x, z, exp_z, masks, ...).
    return 2 * c * in_bytes + 2 * 4 + 2 * 4 + (5 * c + 12) * 4


def _pick_tile(hw, c, in_bytes, tile_hw=None):
    """Lane-count of the pixel tile: byte-sized, 128-aligned, VMEM-capped."""
    per_lane = _per_lane_vmem_bytes(c, in_bytes)
    vmem_cap = max(_LANE, (_VMEM_BUDGET_BYTES // per_lane) // _LANE * _LANE)
    if tile_hw is None:
        tile = max(_LANE, (_TARGET_BLOCK_BYTES // (c * in_bytes)) // _LANE * _LANE)
    else:
        # round user tile down to a lane multiple (block legality when HW > tile)
        tile = max(_LANE, (int(tile_hw) // _LANE) * _LANE)
    tile = min(tile, vmem_cap, _MAX_TILE)
    if hw <= tile:
        return hw          # single full-row block (full dims are always legal)
    return tile


# ----------------------------------------------------------------------------
# Pallas kernel
# ----------------------------------------------------------------------------
def _focal_kernel(x_ref, t_ref, loss_ref, cnt_ref, lsum_sc, cnt_sc, *,
                  alpha, gamma, ignore_label, hw, tile_hw):
    c_split = pl.program_id(0)
    j = pl.program_id(2)
    n_inner = pl.num_programs(2)

    # reset the per-(split, batch-row) accumulators at the start of its tile loop
    @pl.when(j == 0)
    def _():
        lsum_sc[...] = jnp.zeros_like(lsum_sc)
        cnt_sc[...] = jnp.zeros_like(cnt_sc)

    x = x_ref[0].astype(jnp.float32)            # (C, T) logits, classes on sublanes
    t = t_ref[0]                                # (1, T) int32 targets

    # logical tile index for this (split, inner) step; clamped blocks past the
    # end of the row read stale-but-valid data that the mask zeroes out.
    tile_idx = c_split * n_inner + j
    pix = tile_idx * tile_hw + jax.lax.broadcasted_iota(jnp.int32, t.shape, 1)
    valid = (t != ignore_label) & (pix < hw)                             # (1, T)

    # log-softmax pieces over the class (sublane) axis.
    m = jnp.max(x, axis=0, keepdims=True)                                # (1, T)
    z = x - m                                                            # (C, T)
    exp_z = jnp.exp(z)                                                   # (C, T)
    sum_exp = jnp.sum(exp_z, axis=0, keepdims=True)                      # (1, T)

    # (C, 1) iota broadcast against (1, T) targets -> bool one-hot mask; avoids
    # materializing a (C, T) int32 iota (lower vreg/VMEM pressure at big tiles).
    class_ids = jax.lax.broadcasted_iota(jnp.int32, (x.shape[0], 1), 0)  # (C, 1)
    onehot = class_ids == t                                              # (C, T)

    z_t = jnp.sum(jnp.where(onehot, z, 0.0), axis=0, keepdims=True)      # (1, T)
    exp_zt = jnp.sum(jnp.where(onehot, exp_z, 0.0), axis=0, keepdims=True)

    logp_t = z_t - jnp.log(sum_exp)                                      # (1, T)
    # reuse exp_z for pt instead of exp(logp_t): removes one exp per pixel.
    pt = exp_zt / sum_exp                                                # (1, T)

    one_m_pt = 1.0 - pt
    if float(gamma) == int(gamma):
        focal_term = jax.lax.integer_pow(one_m_pt, int(gamma))           # VPU muls
    else:
        focal_term = one_m_pt ** gamma                                   # EUP path

    # TODO(synk): per-class tensor alpha (self.alpha[targets]) not implemented;
    # scalar alpha only (module default alpha=1).
    loss = -alpha * focal_term * logp_t                                  # (1, T)

    # vreg-wide partial accumulation (pure VPU); the where-select keeps any
    # garbage from ragged / clamped-tile reads out of the sums.
    lsum_sc[...] += jnp.where(valid, loss, 0.0)
    cnt_sc[...] += jnp.where(valid, 1.0, 0.0)

    # flush: one scalar reduce per (split, batch-row), only on its last tile
    @pl.when(j == n_inner - 1)
    def _():
        loss_ref[...] = jnp.sum(lsum_sc[...]).reshape(1, 1, 1, 1)
        cnt_ref[...] = jnp.sum(cnt_sc[...]).reshape(1, 1, 1, 1)


# ----------------------------------------------------------------------------
# _forward: single (score, target) focal loss
# ----------------------------------------------------------------------------
def focal_forward(score, target, *, alpha=1.0, gamma=2, ignore_label=-1,
                  reduction='mean', tile_hw=None):
    """score: [B, C, H, W] float logits; target: [B, H, W] int class indices."""
    if target.ndim == 4:                       # mirrors torch: targets.argmax(1)
        target = jnp.argmax(target, axis=1)

    B, C, H, W = score.shape
    HW = H * W
    in_bytes = jnp.dtype(score.dtype).itemsize

    # pure reshapes (no data movement, no dtype change): pixels -> lane axis
    x = score.reshape(B, C, HW)
    t = target.astype(jnp.int32).reshape(B, 1, HW)

    tile = _pick_tile(HW, C, in_bytes, tile_hw)
    n_tiles = pl.cdiv(HW, tile)

    # leading split keeps both v7x TensorCores busy even when B is 1 / odd;
    # on 1-TC chips it costs at most one fully-masked tile per row.
    n_split = 2 if n_tiles >= 2 else 1
    n_inner = pl.cdiv(n_tiles, n_split)

    per_lane = _per_lane_vmem_bytes(C, in_bytes)
    vmem_limit = int(min(60 * 1024 * 1024,
                         max(32 * 1024 * 1024, 2 * per_lane * tile)))

    cost = pl.CostEstimate(
        flops=int(B * HW * (6 * C + 20)),
        transcendentals=int(B * HW * (C + 2)),
        bytes_accessed=int(B * C * HW * in_bytes + B * HW * 4
                           + 2 * n_split * B * 4),
    )

    kernel = functools.partial(
        _focal_kernel,
        alpha=float(alpha),
        gamma=gamma,
        ignore_label=int(ignore_label),
        hw=HW,
        tile_hw=tile,
    )

    def in_map(c, b, j):
        # clamp out-of-range tiles (odd tile counts on the second split); the
        # kernel's pixel mask zeroes their contribution.
        return (b, 0, jnp.minimum(c * n_inner + j, n_tiles - 1))

    def out_map(c, b, j):
        return (c, b, 0, 0)

    loss_part, cnt_part = pl.pallas_call(
        kernel,
        out_shape=(
            jax.ShapeDtypeStruct((n_split, B, 1, 1), jnp.float32),
            jax.ShapeDtypeStruct((n_split, B, 1, 1), jnp.float32),
        ),
        grid_spec=pltpu.PrefetchScalarGridSpec(
            num_scalar_prefetch=0,
            grid=(n_split, B, n_inner),
            in_specs=[
                pl.BlockSpec((1, C, tile), in_map),
                pl.BlockSpec((1, 1, tile), in_map),
            ],
            out_specs=[
                pl.BlockSpec((1, 1, 1, 1), out_map),
                pl.BlockSpec((1, 1, 1, 1), out_map),
            ],
            scratch_shapes=[
                pltpu.VMEM((1, tile), jnp.float32),
                pltpu.VMEM((1, tile), jnp.float32),
            ],
        ),
        compiler_params=pltpu.CompilerParams(
            dimension_semantics=("parallel", "parallel", "arbitrary"),
            vmem_limit_bytes=vmem_limit,
        ),
        cost_estimate=cost,
    )(x, t)

    loss_sum = jnp.sum(loss_part)
    if reduction == 'sum':
        return loss_sum
    # TODO(synk): reduction='none' (per-pixel loss output) not implemented.
    # Note: divide-by-zero when every pixel is ignore_label matches the torch
    # semantics (mean of an empty selection -> nan), so no guard is added.
    return loss_sum / jnp.sum(cnt_part)        # 'mean' over valid pixels


# ----------------------------------------------------------------------------
# forward: mirrors Focal.forward with an in-script synthetic config
# ----------------------------------------------------------------------------
NUM_OUTPUTS = 1
BALANCE_WEIGHTS = (1.0,)
SB_WEIGHTS = 1.0


def focal_module_forward(score, target, *, alpha=1.0, gamma=2, ignore_label=-1):
    if NUM_OUTPUTS == 1 and not isinstance(score, (list, tuple)):
        score = [score]
    if len(BALANCE_WEIGHTS) == len(score):
        return sum(
            w * focal_forward(x, target, alpha=alpha, gamma=gamma,
                              ignore_label=ignore_label)
            for w, x in zip(BALANCE_WEIGHTS, score)
        )
    elif len(score) == 1:
        return SB_WEIGHTS * focal_forward(score[0], target, alpha=alpha,
                                          gamma=gamma, ignore_label=ignore_label)
    else:
        raise ValueError("lengths of prediction and target are not identical!")


# ----------------------------------------------------------------------------
# pure-JAX reference for validation
# ----------------------------------------------------------------------------
def _focal_ref(score, target, alpha=1.0, gamma=2, ignore_label=-1):
    B, C, H, W = score.shape
    t = target.astype(jnp.int32)
    valid = t != ignore_label
    t = jnp.where(valid, t, 0)
    log_probs = jax.nn.log_softmax(score.astype(jnp.float32), axis=1)   # [B,C,H,W]
    one_hot = jax.nn.one_hot(t, C, axis=1, dtype=jnp.float32)           # [B,C,H,W]
    logp_t = jnp.sum(log_probs * one_hot, axis=1)                       # [B,H,W]
    pt = jnp.exp(logp_t)
    loss = -alpha * (1.0 - pt) ** gamma * logp_t
    loss = jnp.where(valid, loss, 0.0)
    return jnp.sum(loss) / jnp.sum(valid.astype(jnp.float32))


if __name__ == "__main__":
    key = jax.random.PRNGKey(0)
    keys = jax.random.split(key, 6)

    # check 1: single-tile path, f32 logits
    B, C, H, W = 2, 4, 16, 16
    score = jax.random.normal(keys[0], (B, C, H, W), dtype=jnp.float32)
    target = jax.random.randint(keys[1], (B, H, W), 0, C, dtype=jnp.int32)
    ignore_mask = jax.random.bernoulli(keys[2], 0.1, (B, H, W))
    target = jnp.where(ignore_mask, -1, target)

    out = jax.jit(focal_module_forward)(score, target)
    out = jax.block_until_ready(out)
    ref = _focal_ref(score, target)
    assert jnp.allclose(out, ref, atol=1e-5, rtol=1e-5), (out, ref)

    # check 2: multi-tile + ragged last tile + even 2-way core split
    # (HW=384, tile=256 -> n_tiles=2, one tile per split)
    B2, C2, H2, W2 = 2, 5, 16, 24
    score2 = jax.random.normal(keys[3], (B2, C2, H2, W2), dtype=jnp.float32)
    target2 = jax.random.randint(keys[4], (B2, H2, W2), 0, C2, dtype=jnp.int32)
    ignore_mask2 = jax.random.bernoulli(keys[5], 0.1, (B2, H2, W2))
    target2 = jnp.where(ignore_mask2, -1, target2)

    out2 = jax.block_until_ready(focal_forward(score2, target2, tile_hw=256))
    ref2 = _focal_ref(score2, target2)
    assert jnp.allclose(out2, ref2, atol=1e-5, rtol=1e-5), (out2, ref2)

    # check 3: odd tile count with B=1 (n_tiles=3 -> split 2, one clamped/masked
    # tile on the second split)
    out3 = jax.block_until_ready(
        focal_forward(score2[:1], target2[:1], tile_hw=128))
    ref3 = _focal_ref(score2[:1], target2[:1])
    assert jnp.allclose(out3, ref3, atol=1e-5, rtol=1e-5), (out3, ref3)

    # check 4: bf16 logits fed straight through (HBM traffic halved; in-kernel
    # widening to f32 keeps the math f32)
    score_bf16 = score.astype(jnp.bfloat16)
    out4 = jax.block_until_ready(focal_forward(score_bf16, target))
    ref4 = _focal_ref(score_bf16, target)
    assert jnp.allclose(out4, ref4, atol=1e-4, rtol=1e-4), (out4, ref4)

    print("KERNEL_OK")
</pallas_src>

<mosaic_0001>
module attributes {stable_mosaic.version = 11 : i64} {
  func.func @_focal_kernel(%arg0: i32, %arg1: i32, %arg2: i32, %arg3: memref<1x4x256xf32, #tpu.memory_space<vmem>>, %arg4: memref<1x1x256xi32, #tpu.memory_space<vmem>>, %arg5: memref<1x1x1x1xf32, #tpu.memory_space<vmem>>, %arg6: memref<1x1x1x1xf32, #tpu.memory_space<vmem>>, %arg7: memref<1x256xf32, #tpu.memory_space<vmem>>, %arg8: memref<1x256xf32, #tpu.memory_space<vmem>>) attributes {dimension_semantics = [#tpu.dimension_semantics<parallel>, #tpu.dimension_semantics<parallel>, #tpu.dimension_semantics<arbitrary>], iteration_bounds = array<i64: 1, 2, 1>, scalar_prefetch = 0 : i64, scratch_operands = 2 : i64, tpu.core_type = #tpu.core_type<tc>, window_params = [{transform_indices = @transform_0, window_bounds = array<i64: 1, 4, 256>}, {transform_indices = @transform_1, window_bounds = array<i64: 1, 1, 256>}, {transform_indices = @transform_2, window_bounds = array<i64: 1, 1, 1, 1>}, {transform_indices = @transform_3, window_bounds = array<i64: 1, 1, 1, 1>}]} {
    %c0_i32 = arith.constant 0 : i32
    %0 = arith.cmpi eq, %arg2, %c0_i32 : i32
    %1 = arith.extui %0 : i1 to i32
    %c0_i32_0 = arith.constant 0 : i32
    %2 = arith.cmpi ne, %1, %c0_i32_0 : i32
    scf.if %2 {
      %cst_27 = arith.constant 0.000000e+00 : f32
      %60 = vector.broadcast %cst_27 : f32 to vector<1x256xf32>
      %c0_28 = arith.constant 0 : index
      %c0_29 = arith.constant 0 : index
      %61 = vector.load %arg7[%c0_28, %c0_29] : memref<1x256xf32, #tpu.memory_space<vmem>>, vector<1x256xf32>
      tpu.vector_store %arg7[%c0_28, %c0_29], %60 {strides = array<i32>} : memref<1x256xf32, #tpu.memory_space<vmem>>, vector<1x256xf32>,
      %cst_30 = arith.constant 0.000000e+00 : f32
      %62 = vector.broadcast %cst_30 : f32 to vector<1x256xf32>
      %c0_31 = arith.constant 0 : index
      %c0_32 = arith.constant 0 : index
      %63 = vector.load %arg8[%c0_31, %c0_32] : memref<1x256xf32, #tpu.memory_space<vmem>>, vector<1x256xf32>
      tpu.vector_store %arg8[%c0_31, %c0_32], %62 {strides = array<i32>} : memref<1x256xf32, #tpu.memory_space<vmem>>, vector<1x256xf32>,
    } else {
    }
    %c0 = arith.constant 0 : index
    %c0_1 = arith.constant 0 : index
    %c0_2 = arith.constant 0 : index
    %3 = vector.load %arg3[%c0, %c0_1, %c0_2] : memref<1x4x256xf32, #tpu.memory_space<vmem>>, vector<1x4x256xf32>
    %4 = vector.shape_cast %3 : vector<1x4x256xf32> to vector<4x256xf32>
    %c0_3 = arith.constant 0 : index
    %c0_4 = arith.constant 0 : index
    %c0_5 = arith.constant 0 : index
    %5 = vector.load %arg4[%c0_3, %c0_4, %c0_5] : memref<1x1x256xi32, #tpu.memory_space<vmem>>, vector<1x1x256xi32>
    %6 = vector.shape_cast %5 : vector<1x1x256xi32> to vector<1x256xi32>
    %c1_i32 = arith.constant 1 : i32
    %7 = arith.muli %arg0, %c1_i32 : i32
    %8 = arith.addi %7, %arg2 : i32
    %c256_i32 = arith.constant 256 : i32
    %9 = arith.muli %8, %c256_i32 : i32
    %10 = tpu.iota {dimensions = array<i32: 1>} : vector<1x256xi32>
    %11 = vector.broadcast %9 : i32 to vector<1x256xi32>
    %12 = arith.addi %11, %10 : vector<1x256xi32>
    %c-1_i32 = arith.constant -1 : i32
    %13 = vector.broadcast %c-1_i32 : i32 to vector<1x256xi32>
    %14 = arith.cmpi ne, %6, %13 : vector<1x256xi32>
    %c256_i32_6 = arith.constant 256 : i32
    %15 = vector.broadcast %c256_i32_6 : i32 to vector<1x256xi32>
    %16 = arith.cmpi slt, %12, %15 : vector<1x256xi32>
    %17 = arith.andi %14, %16 : vector<1x256xi1>
    %cst = arith.constant dense<0xFF800000> : vector<256xf32>
    %18 = vector.multi_reduction <maximumf>, %4, %cst [0] : vector<4x256xf32> to vector<256xf32>
    %19 = vector.shape_cast %18 : vector<256xf32> to vector<1x256xf32>
    %20 = vector.broadcast %19 : vector<1x256xf32> to vector<4x256xf32>
    %21 = arith.subf %4, %20 : vector<4x256xf32>
    %22 = math.exp %21 : vector<4x256xf32>
    %cst_7 = arith.constant dense<0.000000e+00> : vector<256xf32>
    %23 = vector.multi_reduction <add>, %22, %cst_7 [0] : vector<4x256xf32> to vector<256xf32>
    %24 = vector.shape_cast %23 : vector<256xf32> to vector<1x256xf32>
    %25 = tpu.iota {dimensions = array<i32: 0>} : vector<4x1xi32>
    %26 = vector.broadcast %25 : vector<4x1xi32> to vector<4x256xi32>
    %27 = vector.broadcast %6 : vector<1x256xi32> to vector<4x256xi32>
    %28 = arith.cmpi eq, %26, %27 : vector<4x256xi32>
    %cst_8 = arith.constant 0.000000e+00 : f32
    %29 = vector.broadcast %cst_8 : f32 to vector<4x256xf32>
    %30 = arith.select %28, %21, %29 : vector<4x256xi1>, vector<4x256xf32>
    %cst_9 = arith.constant dense<0.000000e+00> : vector<256xf32>
    %31 = vector.multi_reduction <add>, %30, %cst_9 [0] : vector<4x256xf32> to vector<256xf32>
    %32 = vector.shape_cast %31 : vector<256xf32> to vector<1x256xf32>
    %cst_10 = arith.constant 0.000000e+00 : f32
    %33 = vector.broadcast %cst_10 : f32 to vector<4x256xf32>
    %34 = arith.select %28, %22, %33 : vector<4x256xi1>, vector<4x256xf32>
    %cst_11 = arith.constant dense<0.000000e+00> : vector<256xf32>
    %35 = vector.multi_reduction <add>, %34, %cst_11 [0] : vector<4x256xf32> to vector<256xf32>
    %36 = vector.shape_cast %35 : vector<256xf32> to vector<1x256xf32>
    %37 = math.log %24 : vector<1x256xf32>
    %38 = arith.subf %32, %37 : vector<1x256xf32>
    %39 = arith.divf %36, %24 : vector<1x256xf32>
    %cst_12 = arith.constant 1.000000e+00 : f32
    %40 = vector.broadcast %cst_12 : f32 to vector<1x256xf32>
    %41 = arith.subf %40, %39 : vector<1x256xf32>
    %42 = arith.mulf %41, %41 : vector<1x256xf32>
    %cst_13 = arith.constant -1.000000e+00 : f32
    %43 = vector.broadcast %cst_13 : f32 to vector<1x256xf32>
    %44 = arith.mulf %43, %42 : vector<1x256xf32>
    %45 = arith.mulf %44, %38 : vector<1x256xf32>
    %c0_14 = arith.constant 0 : index
    %c0_15 = arith.constant 0 : index
    %46 = vector.load %arg7[%c0_14, %c0_15] : memref<1x256xf32, #tpu.memory_space<vmem>>, vector<1x256xf32>
    %cst_16 = arith.constant 0.000000e+00 : f32
    %47 = vector.broadcast %cst_16 : f32 to vector<1x256xf32>
    %48 = arith.select %17, %45, %47 : vector<1x256xi1>, vector<1x256xf32>
    %49 = arith.addf %46, %48 : vector<1x256xf32>
    %c0_17 = arith.constant 0 : index
    %c0_18 = arith.constant 0 : index
    %50 = vector.load %arg7[%c0_17, %c0_18] : memref<1x256xf32, #tpu.memory_space<vmem>>, vector<1x256xf32>
    tpu.vector_store %arg7[%c0_17, %c0_18], %49 {strides = array<i32>} : memref<1x256xf32, #tpu.memory_space<vmem>>, vector<1x256xf32>,
    %c0_19 = arith.constant 0 : index
    %c0_20 = arith.constant 0 : index
    %51 = vector.load %arg8[%c0_19, %c0_20] : memref<1x256xf32, #tpu.memory_space<vmem>>, vector<1x256xf32>
    %cst_21 = arith.constant 1.000000e+00 : f32
    %cst_22 = arith.constant 0.000000e+00 : f32
    %52 = vector.broadcast %cst_21 : f32 to vector<1x256xf32>
    %53 = vector.broadcast %cst_22 : f32 to vector<1x256xf32>
    %54 = arith.select %17, %52, %53 : vector<1x256xi1>, vector<1x256xf32>
    %55 = arith.addf %51, %54 : vector<1x256xf32>
    %c0_23 = arith.constant 0 : index
    %c0_24 = arith.constant 0 : index
    %56 = vector.load %arg8[%c0_23, %c0_24] : memref<1x256xf32, #tpu.memory_space<vmem>>, vector<1x256xf32>
    tpu.vector_store %arg8[%c0_23, %c0_24], %55 {strides = array<i32>} : memref<1x256xf32, #tpu.memory_space<vmem>>, vector<1x256xf32>,
    %c0_i32_25 = arith.constant 0 : i32
    %57 = arith.cmpi eq, %arg2, %c0_i32_25 : i32
    %58 = arith.extui %57 : i1 to i32
    %c0_i32_26 = arith.constant 0 : i32
    %59 = arith.cmpi ne, %58, %c0_i32_26 : i32
    scf.if %59 {
      %c0_27 = arith.constant 0 : index
      %c0_28 = arith.constant 0 : index
      %60 = vector.load %arg7[%c0_27, %c0_28] : memref<1x256xf32, #tpu.memory_space<vmem>>, vector<1x256xf32>
      %61 = vector.shape_cast %60 : vector<1x256xf32> to vector<1x1x256xf32>
      %cst_29 = arith.constant dense<0.000000e+00> : vector<1xf32>
      %62 = vector.multi_reduction <add>, %61, %cst_29 [1, 2] : vector<1x1x256xf32> to vector<1xf32>
      %63 = vector.shape_cast %62 : vector<1xf32> to vector<1x1x1xf32>
      %64 = vector.extract %63[0, 0, 0] : f32 from vector<1x1x1xf32>
      %65 = vector.broadcast %64 : f32 to vector<1x1x1x1xf32>
      %c0_30 = arith.constant 0 : index
      %c0_31 = arith.constant 0 : index
      %c0_32 = arith.constant 0 : index
      %c0_33 = arith.constant 0 : index
      %66 = vector.load %arg5[%c0_30, %c0_31, %c0_32, %c0_33] : memref<1x1x1x1xf32, #tpu.memory_space<vmem>>, vector<1x1x1x1xf32>
      tpu.vector_store %arg5[%c0_30, %c0_31, %c0_32, %c0_33], %65 {strides = array<i32>} : memref<1x1x1x1xf32, #tpu.memory_space<vmem>>, vector<1x1x1x1xf32>,
      %c0_34 = arith.constant 0 : index
      %c0_35 = arith.constant 0 : index
      %67 = vector.load %arg8[%c0_34, %c0_35] : memref<1x256xf32, #tpu.memory_space<vmem>>, vector<1x256xf32>
      %68 = vector.shape_cast %67 : vector<1x256xf32> to vector<1x1x256xf32>
      %cst_36 = arith.constant dense<0.000000e+00> : vector<1xf32>
      %69 = vector.multi_reduction <add>, %68, %cst_36 [1, 2] : vector<1x1x256xf32> to vector<1xf32>
      %70 = vector.shape_cast %69 : vector<1xf32> to vector<1x1x1xf32>
      %71 = vector.extract %70[0, 0, 0] : f32 from vector<1x1x1xf32>
      %72 = vector.broadcast %71 : f32 to vector<1x1x1x1xf32>
      %c0_37 = arith.constant 0 : index
      %c0_38 = arith.constant 0 : index
      %c0_39 = arith.constant 0 : index
      %c0_40 = arith.constant 0 : index
      %73 = vector.load %arg6[%c0_37, %c0_38, %c0_39, %c0_40] : memref<1x1x1x1xf32, #tpu.memory_space<vmem>>, vector<1x1x1x1xf32>
      tpu.vector_store %arg6[%c0_37, %c0_38, %c0_39, %c0_40], %72 {strides = array<i32>} : memref<1x1x1x1xf32, #tpu.memory_space<vmem>>, vector<1x1x1x1xf32>,
    } else {
    }
    return
  }
  func.func @transform_0(%arg0: i32, %arg1: i32, %arg2: i32) -> (i32, i32, i32) {
    %c1_i32 = arith.constant 1 : i32
    %0 = arith.muli %arg0, %c1_i32 : i32
    %1 = arith.addi %0, %arg2 : i32
    %c0_i32 = arith.constant 0 : i32
    %2 = arith.minsi %1, %c0_i32 : i32
    %c0_i32_0 = arith.constant 0 : i32
    %c0_i32_1 = arith.constant 0 : i32
    return %arg1, %c0_i32_0, %2 : i32, i32, i32
  }
  func.func @transform_1(%arg0: i32, %arg1: i32, %arg2: i32) -> (i32, i32, i32) {
    %c1_i32 = arith.constant 1 : i32
    %0 = arith.muli %arg0, %c1_i32 : i32
    %1 = arith.addi %0, %arg2 : i32
    %c0_i32 = arith.constant 0 : i32
    %2 = arith.minsi %1, %c0_i32 : i32
    %c0_i32_0 = arith.constant 0 : i32
    %c0_i32_1 = arith.constant 0 : i32
    return %arg1, %c0_i32_0, %2 : i32, i32, i32
  }
  func.func @transform_2(%arg0: i32, %arg1: i32, %arg2: i32) -> (i32, i32, i32, i32) {
    %c0_i32 = arith.constant 0 : i32
    %c0_i32_0 = arith.constant 0 : i32
    %c0_i32_1 = arith.constant 0 : i32
    return %arg0, %arg1, %c0_i32, %c0_i32_0 : i32, i32, i32, i32
  }
  func.func @transform_3(%arg0: i32, %arg1: i32, %arg2: i32) -> (i32, i32, i32, i32) {
    %c0_i32 = arith.constant 0 : i32
    %c0_i32_0 = arith.constant 0 : i32
    %c0_i32_1 = arith.constant 0 : i32
    return %arg0, %arg1, %c0_i32, %c0_i32_0 : i32, i32, i32, i32
  }
}

</mosaic_0001>

<llo_original>
// kernel: focal_module_forward.1
$region0: #{focal_module_forward.1}
  #allocation0 [shape = 'u32[]', space=smem, size = 0x4, offset = 0x4, fixed_abs, tag = 'smem constant byte address 0x4 - core index']
  #allocation1 [shape = 'u32[144,128]{1,0:T(1,128)}', space=vmem, size = 0x12000, scoped, tag = 'internal scratch']
  #allocation2 [shape = 'f32[1,256]{1,0:T(1,128)}', space=vmem, size = 0x400, scoped, tag = 'scratch operand']
  #allocation3 [shape = 'f32[1,256]{1,0:T(1,128)}', space=vmem, size = 0x400, scoped, tag = 'scratch operand']
  %s0 = inlined_call_operand.vmem [shape: f32[2,4,256], index: 0, kind: input, shape index: {}]
  %s1 = inlined_call_operand.vmem [shape: s32[2,1,256], index: 1, kind: input, shape index: {}]
  %s2 = inlined_call_operand.vmem [shape: f32[1,2,1,1], index: 2, kind: output, shape index: {0}]
  %s3 = inlined_call_operand.vmem [shape: f32[1,2,1,1], index: 3, kind: output, shape index: {1}]
  %4 = xla_tuple %s2, %s3
  %s5 = sld [smem:[#allocation0]]
  $region57: #{focal_module_forward.1} parent=0
    _
  %s7 = ssub.s32 1, %s5
  %s8 = scalar_select 0, %s7, %s5
  loop: start=0, step=1, limit=4
  $region2: #{focal_module_forward.1} parent=0 // loop_pre_header
    _
  $region3: #{focal_module_forward.1} parent=0 // loop_header
    %s10 = sphi 0, %s14
    %p11 = scmp.ge.s32.totalorder %s10, 4
    %s17 = sphi 0, %s36
    %s18 = sphi 0, %s32
    %s19 = sphi 0, %s28
    %s20 = sphi 0, %s17
    %s21 = sphi 0, %s18
    %s22 = sphi 0, %s19
    %s23 = sphi 0, %s20
    %s24 = sphi 0, %s21
    %s25 = sphi 0, %s22
    %s47 = sphi 0, %s49
    %s50 = sphi 0, %s47
    %s51 = sphi 0, %s50
    %s67 = sphi 0, %s51
    %s81 = sphi 0, %s83
    %s84 = sphi 0, %s81
    %s85 = sphi 0, %s84
    %s101 = sphi 0, %s85
    %s109 = sphi 0, %s111
    %s112 = sphi 0, %s109
    %s113 = sphi 0, %s112
    %s129 = sphi 0, %s113
    %s137 = sphi 0, %s139
    %s140 = sphi 0, %s137
    %s141 = sphi 0, %s140
    %s157 = sphi 0, %s141
  $region4: #{focal_module_forward.1} parent=0 // loop_header_branch
    %13 = sbr.rel (%p11) target = $region8
  $region5: #{focal_module_forward.1} parent=0 // loop_body
    %s15 = ssub.s32 %s10, 1
    %s16 = ssub.s32 %s10, 2
    %s26 = sadd.s32 1, %s19
    %p27 = scmp.ge.s32.totalorder %s26, 1
    %s28 = scalar_select %p27, 0, %s26
    %s29 = sadd.s32 1, %s18
    %s30 = scalar_select %p27, %s29, %s18
    %p31 = scmp.ge.s32.totalorder %s30, 2
    %s32 = scalar_select %p31, 0, %s30
    %s33 = sadd.s32 1, %s17
    %s34 = scalar_select %p31, %s33, %s17
    %p35 = scmp.ge.s32.totalorder %s34, 1
    %s36 = scalar_select %p35, 0, %s34
    %s37 = sadd.s32 %s17, %s19
    %p38 = scmp.lt.s32.totalorder %s37, 0
    %s39 = scalar_select %p38, %s37, 0
    %s40 = sadd.s32 %s36, %s28
    %p41 = scmp.lt.s32.totalorder %s40, 0
    %s42 = scalar_select %p41, %s40, 0
    %s43 = ssub.s32 %s18, %s32
    %s44 = ssub.s32 %s39, %s42
    %s45 = sor.u32 %s43, %s44
    %p46 = scmp.eq.s32.totalorder %s45, 0
    %s48 = sadd.s32 %s47, 1
    %s49 = scalar_select %p46, %s47, %s48
    %p52 = pneg %p46
    %p53 = scmp.eq.s32.totalorder %s10, 1
    %p54 = por %p52, %p53
    %p55 = scmp.ne.s32.totalorder %s47, %s50
    %p56 = scmp.eq.s32.totalorder %s10, 0
    %p57 = por %p55, %p56
    %p58 = scmp.ne.s32.totalorder %s47, %s50
    %p59 = scmp.eq.s32.totalorder %s15, 1
    %p60 = por %p58, %p59
    %p61 = scmp.ne.s32.totalorder %s50, %s51
    %p62 = scmp.eq.s32.totalorder %s15, 0
    %p63 = por %p61, %p62
    %p64 = scmp.ne.s32.totalorder %s50, %s51
    %p65 = scmp.eq.s32.totalorder %s16, 1
    %p66 = por %p64, %p65
    %p68 = scmp.ne.s32.totalorder %s51, %s67
    %p69 = scmp.eq.s32.totalorder %s16, 0
    %p70 = por %p68, %p69
    %s71 = sadd.s32 %s17, %s19
    %p72 = scmp.lt.s32.totalorder %s71, 0
    %s73 = scalar_select %p72, %s71, 0
    %s74 = sadd.s32 %s36, %s28
    %p75 = scmp.lt.s32.totalorder %s74, 0
    %s76 = scalar_select %p75, %s74, 0
    %s77 = ssub.s32 %s18, %s32
    %s78 = ssub.s32 %s73, %s76
    %s79 = sor.u32 %s77, %s78
    %p80 = scmp.eq.s32.totalorder %s79, 0
    %s82 = sadd.s32 %s81, 1
    %s83 = scalar_select %p80, %s81, %s82
    %p86 = pneg %p80
    %p87 = scmp.eq.s32.totalorder %s10, 1
    %p88 = por %p86, %p87
    %p89 = scmp.ne.s32.totalorder %s81, %s84
    %p90 = scmp.eq.s32.totalorder %s10, 0
    %p91 = por %p89, %p90
    %p92 = scmp.ne.s32.totalorder %s81, %s84
    %p93 = scmp.eq.s32.totalorder %s15, 1
    %p94 = por %p92, %p93
    %p95 = scmp.ne.s32.totalorder %s84, %s85
    %p96 = scmp.eq.s32.totalorder %s15, 0
    %p97 = por %p95, %p96
    %p98 = scmp.ne.s32.totalorder %s84, %s85
    %p99 = scmp.eq.s32.totalorder %s16, 1
    %p100 = por %p98, %p99
    %p102 = scmp.ne.s32.totalorder %s85, %s101
    %p103 = scmp.eq.s32.totalorder %s16, 0
    %p104 = por %p102, %p103
    %s105 = ssub.s32 %s17, %s36
    %s106 = ssub.s32 %s18, %s32
    %s107 = sor.u32 %s105, %s106
    %p108 = scmp.eq.s32.totalorder %s107, 0
    %s110 = sadd.s32 %s109, 1
    %s111 = scalar_select %p108, %s109, %s110
    %p114 = pneg %p108
    %p115 = scmp.eq.s32.totalorder %s10, 1
    %p116 = por %p114, %p115
    %p117 = scmp.ne.s32.totalorder %s109, %s112
    %p118 = scmp.eq.s32.totalorder %s10, 0
    %p119 = por %p117, %p118
    %p120 = scmp.ne.s32.totalorder %s109, %s112
    %p121 = scmp.eq.s32.totalorder %s15, 1
    %p122 = por %p120, %p121
    %p123 = scmp.ne.s32.totalorder %s112, %s113
    %p124 = scmp.eq.s32.totalorder %s15, 0
    %p125 = por %p123, %p124
    %p126 = scmp.ne.s32.totalorder %s112, %s113
    %p127 = scmp.eq.s32.totalorder %s16, 1
    %p128 = por %p126, %p127
    %p130 = scmp.ne.s32.totalorder %s113, %s129
    %p131 = scmp.eq.s32.totalorder %s16, 0
    %p132 = por %p130, %p131
    %s133 = ssub.s32 %s17, %s36
    %s134 = ssub.s32 %s18, %s32
    %s135 = sor.u32 %s133, %s134
    %p136 = scmp.eq.s32.totalorder %s135, 0
    %s138 = sadd.s32 %s137, 1
    %s139 = scalar_select %p136, %s137, %s138
    %p142 = pneg %p136
    %p143 = scmp.eq.s32.totalorder %s10, 1
    %p144 = por %p142, %p143
    %p145 = scmp.ne.s32.totalorder %s137, %s140
    %p146 = scmp.eq.s32.totalorder %s10, 0
    %p147 = por %p145, %p146
    %p148 = scmp.ne.s32.totalorder %s137, %s140
    %p149 = scmp.eq.s32.totalorder %s15, 1
    %p150 = por %p148, %p149
    %p151 = scmp.ne.s32.totalorder %s140, %s141
    %p152 = scmp.eq.s32.totalorder %s15, 0
    %p153 = por %p151, %p152
    %p154 = scmp.ne.s32.totalorder %s140, %s141
    %p155 = scmp.eq.s32.totalorder %s16, 1
    %p156 = por %p154, %p155
    %p158 = scmp.ne.s32.totalorder %s141, %s157
    %p159 = scmp.eq.s32.totalorder %s16, 0
    %p160 = por %p158, %p159
    %p161 = scmp.le.s32.totalorder 1, %s10
    %p162 = scmp.lt.s32.totalorder %s10, 3
    %p163 = pnand %p161, %p162
    %p164 = pneg %p163
    // Predicated region
    $region9: #{focal_module_forward.1} parent=5 // pred_check
      _
    $region10: #{focal_module_forward.1} parent=5 // pred_check_branch
      %166 = sbr.rel (%p163) target = $region12
    $region11: #{focal_module_forward.1} parent=5 // pred_region
      %s167 = ssub.s32 %s10, 1
    $region12: #{focal_module_forward.1} parent=5 // pred_fallthru
      _
    %p168 = scmp.lt.s32.totalorder %s10, 2
    // Predicated region
    $region13: #{focal_module_forward.1} parent=5 // pred_check
      %p169 = pneg %p168
    $region14: #{focal_module_forward.1} parent=5 // pred_check_branch
      %171 = sbr.rel (%p169) target = $region16
    $region15: #{focal_module_forward.1} parent=5 // pred_region
      // Predicated region
      $region17: #{focal_module_forward.1} parent=15 // pred_check
        %p172 = pneg %p57
      $region18: #{focal_module_forward.1} parent=15 // pred_check_branch
        %174 = sbr.rel (%p172) target = $region20
      $region19: #{focal_module_forward.1} parent=15 // pred_region
        %s175 = sadd.s32 %s17, %s19
        %p176 = scmp.lt.s32.totalorder %s175, 0
        %s177 = scalar_select %p176, %s175, 0
        %s178 = smul.u32 2, %s177
        %p179 = scmp.lt.s32.totalorder %s18, 1
        %s180 = scalar_select %p179, %s18, 1
        %p181 = scmp.lt.s32.totalorder %s178, 1
        %s182 = scalar_select %p181, %s178, 1
        %s183 = smul.addr %s180, 2
        %s184 = sadd.s32 %s182, %s183
        %s185 = smul.addr %s184, 4
        %s186 = scalar_lea.vmem %s0, %s185
        %s187 = sadd.s32 %s17, %s19
        %p188 = scmp.lt.s32.totalorder %s187, 0
        %s189 = scalar_select %p188, %s187, 0
        %s190 = smul.u32 2, %s189
      $region20: #{focal_module_forward.1} parent=15 // pred_fallthru
        _
      // Predicated region
      $region21: #{focal_module_forward.1} parent=15 // pred_check
        %p191 = pneg %p91
      $region22: #{focal_module_forward.1} parent=15 // pred_check_branch
        %193 = sbr.rel (%p191) target = $region24
      $region23: #{focal_module_forward.1} parent=15 // pred_region
        %s194 = sadd.s32 %s17, %s19
        %p195 = scmp.lt.s32.totalorder %s194, 0
        %s196 = scalar_select %p195, %s194, 0
        %s197 = smul.u32 2, %s196
        %p198 = scmp.lt.s32.totalorder %s18, 1
        %s199 = scalar_select %p198, %s18, 1
        %p200 = scmp.lt.s32.totalorder %s197, 1
        %s201 = scalar_select %p200, %s197, 1
        %s202 = smul.addr %s199, 2
        %s203 = sadd.s32 %s201, %s202
        %s204 = scalar_lea.vmem %s1, %s203
        %s205 = sadd.s32 %s17, %s19
        %p206 = scmp.lt.s32.totalorder %s205, 0
        %s207 = scalar_select %p206, %s205, 0
        %s208 = smul.u32 2, %s207
      $region24: #{focal_module_forward.1} parent=15 // pred_fallthru
        _
    $region16: #{focal_module_forward.1} parent=5 // pred_fallthru
      _
    %p209 = scmp.le.s32.totalorder 1, %s10
    %p210 = scmp.lt.s32.totalorder %s10, 3
    %p211 = pnand %p209, %p210
    %p212 = pneg %p211
    // Predicated region
    $region25: #{focal_module_forward.1} parent=5 // pred_check
      _
    $region26: #{focal_module_forward.1} parent=5 // pred_check_branch
      %214 = sbr.rel (%p211) target = $region28
    $region27: #{focal_module_forward.1} parent=5 // pred_region
      %s215 = ssub.s32 %s10, 1
      %s216 = sadd.s32 %s20, %s22
      %p217 = scmp.lt.s32.totalorder %s216, 0
      %s218 = scalar_select %p217, %s216, 0
      %s219 = smul.u32 2, %s218
      %p220 = scmp.lt.s32.totalorder %s21, 1
      %s221 = scalar_select %p220, %s21, 1
      %p222 = scmp.lt.s32.totalorder %s219, 1
      %s223 = scalar_select %p222, %s219, 1
      %s224 = smul.addr %s221, 2
      %s225 = sadd.s32 %s223, %s224
      %s226 = smul.addr %s225, 4
      %s227 = scalar_lea.vmem %s0, %s226
      %p228 = pneg %p63
      %p229 = pneg %p60
      %s230 = sadd.s32 %s20, %s22
      %p231 = scmp.lt.s32.totalorder %s230, 0
      %s232 = scalar_select %p231, %s230, 0
      %s233 = smul.u32 2, %s232
      %p234 = scmp.lt.s32.totalorder %s21, 1
      %s235 = scalar_select %p234, %s21, 1
      %p236 = scmp.lt.s32.totalorder %s233, 1
      %s237 = scalar_select %p236, %s233, 1
      %s238 = smul.addr %s235, 2
      %s239 = sadd.s32 %s237, %s238
      %s240 = scalar_lea.vmem %s1, %s239
      %p241 = pneg %p97
      %p242 = pneg %p94
      %p243 = pneg %p125
      %p244 = pneg %p122
      %p245 = scmp.lt.s32.totalorder %s20, 0
      %s246 = scalar_select %p245, %s20, 0
      %p247 = scmp.lt.s32.totalorder %s21, 1
      %s248 = scalar_select %p247, %s21, 1
      %s249 = smul.addr %s246, 2
      %s250 = sadd.s32 %s248, %s249
      %s251 = scalar_lea.vmem %s2, %s250
      %p252 = pneg %p153
      %p253 = pneg %p150
      %p254 = scmp.lt.s32.totalorder %s20, 0
      %s255 = scalar_select %p254, %s20, 0
      %p256 = scmp.lt.s32.totalorder %s21, 1
      %s257 = scalar_select %p256, %s21, 1
      %s258 = smul.addr %s255, 2
      %s259 = sadd.s32 %s257, %s258
      %s260 = scalar_lea.vmem %s3, %s259
      %s261 = sadd.s32 %s20, %s22
      %p262 = scmp.lt.s32.totalorder %s261, 0
      %s263 = scalar_select %p262, %s261, 0
      %s264 = smul.u32 2, %s263
      %p265 = scmp.lt.s32.totalorder %s21, 1
      %s266 = scalar_select %p265, %s21, 1
      %p267 = scmp.lt.s32.totalorder %s264, 1
      %s268 = scalar_select %p267, %s264, 1
      %s269 = smul.addr %s266, 2
      %s270 = sadd.s32 %s268, %s269
      %s271 = smul.addr %s270, 4
      %s272 = scalar_lea.vmem %s0, %s271
      %s273 = sadd.s32 %s20, %s22
      %p274 = scmp.lt.s32.totalorder %s273, 0
      %s275 = scalar_select %p274, %s273, 0
      %s276 = smul.u32 2, %s275
      %s277 = sadd.s32 %s20, %s22
      %p278 = scmp.lt.s32.totalorder %s277, 0
      %s279 = scalar_select %p278, %s277, 0
      %s280 = smul.u32 2, %s279
      %p281 = scmp.lt.s32.totalorder %s21, 1
      %s282 = scalar_select %p281, %s21, 1
      %p283 = scmp.lt.s32.totalorder %s280, 1
      %s284 = scalar_select %p283, %s280, 1
      %s285 = smul.addr %s282, 2
      %s286 = sadd.s32 %s284, %s285
      %s287 = scalar_lea.vmem %s1, %s286
      %s288 = sadd.s32 %s20, %s22
      %p289 = scmp.lt.s32.totalorder %s288, 0
      %s290 = scalar_select %p289, %s288, 0
      %s291 = smul.u32 2, %s290
      %p292 = scmp.lt.s32.totalorder %s20, 0
      %s293 = scalar_select %p292, %s20, 0
      %p294 = scmp.lt.s32.totalorder %s21, 1
      %s295 = scalar_select %p294, %s21, 1
      %s296 = smul.addr %s293, 2
      %s297 = sadd.s32 %s295, %s296
      %s298 = scalar_lea.vmem %s2, %s297
      %p299 = scmp.lt.s32.totalorder %s20, 0
      %s300 = scalar_select %p299, %s20, 0
      %p301 = scmp.lt.s32.totalorder %s21, 1
      %s302 = scalar_select %p301, %s21, 1
      %s303 = smul.addr %s300, 2
      %s304 = sadd.s32 %s302, %s303
      %s305 = scalar_lea.vmem %s3, %s304
      %p306 = scmp.eq.s32.totalorder %s22, 0
      // Predicated region
      $region29: #{focal_module_forward.1} parent=27 // pred_check
        %p307 = pneg %p306
      $region30: #{focal_module_forward.1} parent=27 // pred_check_branch
        %309 = sbr.rel (%p307) target = $region32
      $region31: #{focal_module_forward.1} parent=27 // pred_region
        %v310 = vlaneseq
        %vm311 = vcmp.ge.s32.totalorder %v310, 0
        %vm312 = vcmp.lt.s32.totalorder %v310, 256
        %vm313 = vmand %vm311, %vm312
        %314 = vst.msk [vmem:[#allocation2] sm:$0x3] %vm313, 0.0
        %315 = vst.msk [vmem:[#allocation3] sm:$0x3] %vm313, 0.0
      $region32: #{focal_module_forward.1} parent=27 // pred_fallthru
        _
      %v316 = vld [vmem:[%s272] sm:$0xff]
      %v317 = vld [vmem:[%s287] sm:$0x3]
      %s318 = sadd.s32 %s20, %s22
      %s319 = smul.u32 %s318, 256
      %v320 = vlaneseq
      %v321 = vand.u32 %v320, 127
      %v322 = vadd.s32 %v321, 128
      %v323 = vstv %s319
      %v324 = vadd.s32 %v323, %v321
      %v325 = vadd.s32 %v323, %v322
      %vm326 = vcmp.ne.s32.totalorder %v317, 4294967295
      %vm327 = vcmp.lt.s32.totalorder %v324, 256
      %vm328 = vcmp.lt.s32.totalorder %v325, 256
      %v329 = vsel %vm327, 1, 0
      %v330 = vsel %vm328, 1, 0
      %v331 = vcombine.low %v329, %v330
      %v333 = vunpack.c.l.s4 1966171168
      %v334 = vunpack.c.0.s8 %v333
      %v335 = vlaneseq
      %v336 = vshrl.u32 %v335, 7
      %v337 = vsub.s32 %v334, %v336
      %v338 = vrot.slane %v331, %v337
      %v340 = vunpack.c.l.s4 1966171168
      %v341 = vunpack.c.0.s8 %v340
      %v342 = vlaneseq
      %v343 = vshrl.u32 %v342, 7
      %v344 = vsub.s32 %v341, %v343
      %v345 = vrot.slane %v338, %v344
      %vm346 = vcmp.ne.s32.totalorder %v345, 0
      %vm347 = vmand %vm326, %vm346
      %v349 = vcombine.high %v316, %v316
      %vm351 = vcmask 1043456
      %v352 = vsel %vm351, %v316, -inf
      %v353 = vrot.slane %v352, 4
      %v354 = vmax.f32 %v352, %v353
      %v355 = vrot.slane %v354, 2
      %v356 = vmax.f32 %v354, %v355
      %v357 = vrot.slane %v356, 1
      %v358 = vmax.f32 %v356, %v357
      %v359 = vsel %vm351, %v349, -inf
      %v360 = vrot.slane %v359, 4
      %v361 = vmax.f32 %v359, %v360
      %v362 = vrot.slane %v361, 2
      %v363 = vmax.f32 %v361, %v362
      %v364 = vrot.slane %v363, 1
      %v365 = vmax.f32 %v363, %v364
      %v368 = vcombine.low %v358, %v365
      %v370 = vsub.f32 %v316, %v368
      %v371 = vmul.f32 %v370, 1.442695
      %v372 = vpow.pop %v371
      %v374 = vcombine.high %v372, %v372
      %v376 = vsel %vm351, %v372, 0.0
      %v377 = vrot.slane %v376, 4
      %v378 = vadd.f32 %v376, %v377
      %v379 = vrot.slane %v378, 2
      %v380 = vadd.f32 %v378, %v379
      %v381 = vrot.slane %v380, 1
      %v382 = vadd.f32 %v380, %v381
      %v383 = vsel %vm351, %v374, 0.0
      %v384 = vrot.slane %v383, 4
      %v385 = vadd.f32 %v383, %v384
      %v386 = vrot.slane %v385, 2
      %v387 = vadd.f32 %v385, %v386
      %v388 = vrot.slane %v387, 1
      %v389 = vadd.f32 %v387, %v388
      %v390 = vlaneseq
      %v391 = vshrl.u32 %v390, 7
      %v392 = vlaneseq
      %v393 = vshrl.u32 %v392, 7
      %v394 = vsub.s32 0, %v393
      %v395 = vrot.slane %v317, %v394
      %v396 = vlaneseq
      %v397 = vshrl.u32 %v396, 7
      %v398 = vsub.s32 1, %v397
      %v399 = vrot.slane %v317, %v398
      %vm400 = vcmp.eq.s32.totalorder %v391, %v395
      %vm401 = vcmp.eq.s32.totalorder %v391, %v399
      %v403 = vcombine.high %v370, %v370
      %v405 = vsel %vm400, %v370, 0.0
      %v406 = vsel %vm401, %v403, 0.0
      %v407 = vsel %vm351, %v405, 0.0
      %v408 = vrot.slane %v407, 4
      %v409 = vadd.f32 %v407, %v408
      %v410 = vrot.slane %v409, 2
      %v411 = vadd.f32 %v409, %v410
      %v412 = vrot.slane %v411, 1
      %v413 = vadd.f32 %v411, %v412
      %v414 = vsel %vm351, %v406, 0.0
      %v415 = vrot.slane %v414, 4
      %v416 = vadd.f32 %v414, %v415
      %v417 = vrot.slane %v416, 2
      %v418 = vadd.f32 %v416, %v417
      %v419 = vrot.slane %v418, 1
      %v420 = vadd.f32 %v418, %v419
      %v421 = vsel %vm400, %v372, 0.0
      %v422 = vsel %vm401, %v374, 0.0
      %v423 = vsel %vm351, %v421, 0.0
      %v424 = vrot.slane %v423, 4
      %v425 = vadd.f32 %v423, %v424
      %v426 = vrot.slane %v425, 2
      %v427 = vadd.f32 %v425, %v426
      %v428 = vrot.slane %v427, 1
      %v429 = vadd.f32 %v427, %v428
      %v430 = vsel %vm351, %v422, 0.0
      %v431 = vrot.slane %v430, 4
      %v432 = vadd.f32 %v430, %v431
      %v433 = vrot.slane %v432, 2
      %v434 = vadd.f32 %v432, %v433
      %v435 = vrot.slane %v434, 1
      %v436 = vadd.f32 %v434, %v435
      %v437 = vlog2.pop %v382
      %v438 = vmul.f32 %v437, 0.6931472
      %v439 = vlog2.pop %v389
      %v440 = vmul.f32 %v439, 0.6931472
      %v441 = vsub.f32 %v413, %v438
      %v442 = vsub.f32 %v420, %v440
      %v443 = vrcp.pop %v382
      %v444 = vmul.f32 %v429, %v443
      %v445 = vrcp.pop %v389
      %v446 = vmul.f32 %v436, %v445
      %v447 = vsub.f32 1.0, %v444
      %v448 = vsub.f32 1.0, %v446
      %v449 = vmul.f32 %v447, %v447
      %v450 = vmul.f32 %v448, %v448
      %v451 = vmul.f32 %v449, -1.0
      %v452 = vmul.f32 %v450, -1.0
      %v453 = vmul.f32 %v451, %v441
      %v454 = vmul.f32 %v452, %v442
      %v455 = vld [vmem:[#allocation2] sm:$0x3]
      %v458 = vcombine.low %v453, %v454
      %v460 = vunpack.c.l.s4 1966171168
      %v461 = vunpack.c.0.s8 %v460
      %v462 = vlaneseq
      %v463 = vshrl.u32 %v462, 7
      %v464 = vsub.s32 %v461, %v463
      %v465 = vrot.slane %v458, %v464
      %v467 = vunpack.c.l.s4 1966171168
      %v468 = vunpack.c.0.s8 %v467
      %v469 = vlaneseq
      %v470 = vshrl.u32 %v469, 7
      %v471 = vsub.s32 %v468, %v470
      %v472 = vrot.slane %v465, %v471
      %v474 = vsel %vm347, %v472, 0.0
      %v475 = vadd.f32 %v455, %v474
      %v476 = vlaneseq
      %vm477 = vcmp.ge.s32.totalorder %v476, 0
      %vm478 = vcmp.lt.s32.totalorder %v476, 256
      %vm479 = vmand %vm477, %vm478
      %480 = vst.msk [vmem:[#allocation2] sm:$0x3] %vm479, %v475
      %v481 = vld [vmem:[#allocation3] sm:$0x3]
      %v482 = vsel %vm347, 1.0, 0.0
      %v483 = vadd.f32 %v481, %v482
      %484 = vst.msk [vmem:[#allocation3] sm:$0x3] %vm479, %v483
      // Predicated region
      $region33: #{focal_module_forward.1} parent=27 // pred_check
        %p485 = pneg %p306
      $region34: #{focal_module_forward.1} parent=27 // pred_check_branch
        %487 = sbr.rel (%p485) target = $region36
      $region35: #{focal_module_forward.1} parent=27 // pred_region
        %v488 = vld [vmem:[#allocation2] sm:$0x3]
        %v490 = vlaneseq
        %v491 = vshrl.u32 %v490, 7
        %v492 = vsub.s32 0, %v491
        %v493 = vrot.slane %v488, %v492
        %v494 = vlaneseq
        %v495 = vshrl.u32 %v494, 7
        %v496 = vsub.s32 1, %v495
        %v497 = vrot.slane %v488, %v496
        %vm500 = vcmask 1040384
        %v501 = vsel %vm500, %v493, 0.0
        %v502 = vsel %vm500, %v497, 0.0
        %v503 = vadd.f32 %v501, %v502
        %504 = vadd.xlane.f32.xlu0 %v503
        %v505 = vpop.xlane.xlu0 %504
        %v506 = vrot.slane %v505, 4
        %v507 = vadd.f32 %v505, %v506
        %v508 = vrot.slane %v507, 2
        %v509 = vadd.f32 %v507, %v508
        %v510 = vrot.slane %v509, 1
        %v511 = vadd.f32 %v509, %v510
        %s512 = vtos %v511
        %v513 = vstv %s512
        %vm514 = vcmask 0
        %515 = vst.msk [vmem:[%s298] sm:$0x1] %vm514, %v513
        %v516 = vld [vmem:[#allocation3] sm:$0x3]
        %v518 = vlaneseq
        %v519 = vshrl.u32 %v518, 7
        %v520 = vsub.s32 0, %v519
        %v521 = vrot.slane %v516, %v520
        %v522 = vlaneseq
        %v523 = vshrl.u32 %v522, 7
        %v524 = vsub.s32 1, %v523
        %v525 = vrot.slane %v516, %v524
        %v528 = vsel %vm500, %v521, 0.0
        %v529 = vsel %vm500, %v525, 0.0
        %v530 = vadd.f32 %v528, %v529
        %531 = vadd.xlane.f32.xlu0 %v530
        %v532 = vpop.xlane.xlu0 %531
        %v533 = vrot.slane %v532, 4
        %v534 = vadd.f32 %v532, %v533
        %v535 = vrot.slane %v534, 2
        %v536 = vadd.f32 %v534, %v535
        %v537 = vrot.slane %v536, 1
        %v538 = vadd.f32 %v536, %v537
        %s539 = vtos %v538
        %v540 = vstv %s539
        %541 = vst.msk [vmem:[%s305] sm:$0x1] %vm514, %v540
      $region36: #{focal_module_forward.1} parent=27 // pred_fallthru
        _
      %p542 = scmp.lt.s32.totalorder %s20, 0
      %s543 = scalar_select %p542, %s20, 0
      %p544 = scmp.lt.s32.totalorder %s21, 1
      %s545 = scalar_select %p544, %s21, 1
      %s546 = smul.addr %s543, 2
      %s547 = sadd.s32 %s545, %s546
      %s548 = scalar_lea.vmem %s2, %s547
      %p549 = scmp.lt.s32.totalorder %s20, 0
      %s550 = scalar_select %p549, %s20, 0
      %p551 = scmp.lt.s32.totalorder %s21, 1
      %s552 = scalar_select %p551, %s21, 1
      %s553 = smul.addr %s550, 2
      %s554 = sadd.s32 %s552, %s553
      %s555 = scalar_lea.vmem %s3, %s554
      // Predicated region
      $region37: #{focal_module_forward.1} parent=27 // pred_check
        %p556 = pneg %p122
      $region38: #{focal_module_forward.1} parent=27 // pred_check_branch
        %558 = sbr.rel (%p556) target = $region40
      $region39: #{focal_module_forward.1} parent=27 // pred_region
        _
      $region40: #{focal_module_forward.1} parent=27 // pred_fallthru
        _
      // Predicated region
      $region41: #{focal_module_forward.1} parent=27 // pred_check
        %p559 = pneg %p150
      $region42: #{focal_module_forward.1} parent=27 // pred_check_branch
        %561 = sbr.rel (%p559) target = $region44
      $region43: #{focal_module_forward.1} parent=27 // pred_region
        _
      $region44: #{focal_module_forward.1} parent=27 // pred_fallthru
        _
    $region28: #{focal_module_forward.1} parent=5 // pred_fallthru
      _
    %p562 = scmp.le.s32.totalorder 2, %s10
    // Predicated region
    $region45: #{focal_module_forward.1} parent=5 // pred_check
      %p563 = pneg %p562
    $region46: #{focal_module_forward.1} parent=5 // pred_check_branch
      %565 = sbr.rel (%p563) target = $region48
    $region47: #{focal_module_forward.1} parent=5 // pred_region
      %s566 = ssub.s32 %s10, 2
      // Predicated region
      $region49: #{focal_module_forward.1} parent=47 // pred_check
        %p567 = pneg %p128
      $region50: #{focal_module_forward.1} parent=47 // pred_check_branch
        %569 = sbr.rel (%p567) target = $region52
      $region51: #{focal_module_forward.1} parent=47 // pred_region
        %p570 = scmp.lt.s32.totalorder %s23, 0
        %s571 = scalar_select %p570, %s23, 0
        %p572 = scmp.lt.s32.totalorder %s24, 1
        %s573 = scalar_select %p572, %s24, 1
        %s574 = smul.addr %s571, 2
        %s575 = sadd.s32 %s573, %s574
        %s576 = scalar_lea.vmem %s2, %s575
      $region52: #{focal_module_forward.1} parent=47 // pred_fallthru
        _
      // Predicated region
      $region53: #{focal_module_forward.1} parent=47 // pred_check
        %p577 = pneg %p156
      $region54: #{focal_module_forward.1} parent=47 // pred_check_branch
        %579 = sbr.rel (%p577) target = $region56
      $region55: #{focal_module_forward.1} parent=47 // pred_region
        %p580 = scmp.lt.s32.totalorder %s23, 0
        %s581 = scalar_select %p580, %s23, 0
        %p582 = scmp.lt.s32.totalorder %s24, 1
        %s583 = scalar_select %p582, %s24, 1
        %s584 = smul.addr %s581, 2
        %s585 = sadd.s32 %s583, %s584
        %s586 = scalar_lea.vmem %s3, %s585
      $region56: #{focal_module_forward.1} parent=47 // pred_fallthru
        _
    $region48: #{focal_module_forward.1} parent=5 // pred_fallthru
      _
  $region6: #{focal_module_forward.1} parent=0 // loop_footer
    %s14 = sadd.s32 1, %s10
  $region7: #{focal_module_forward.1} parent=0 // loop_footer_branch
    %9 = sbr.rel target = $region3
  $region8: #{focal_module_forward.1} parent=0 // loop_exit
    _

</llo_original>
